<compile_context>
chip_gen: v5e
topology: v5e:2x2
jax: 0.10.0
libtpu: 0.0.40
codegen_flags: <defaults>
</compile_context>

<pallas_src>
import functools

import jax
import jax.numpy as jnp
from jax.experimental import pallas as pl
from jax.experimental.pallas import tpu as pltpu


def _ce_loss_kernel(logits_ref, labels_ref, partial_ref, *, tile_n, g_inner, n_rows):
    # logits_ref : (tile_n, C)  model dtype, VMEM (auto double-buffered)
    # labels_ref : (tile_n, 1)  int32, VMEM
    # partial_ref: (1, 1)       f32, SMEM -- per-outer-block partial sum; its
    #              block index only depends on the outer grid axis, so it stays
    #              resident across the inner ('arbitrary') reduction axis.
    o = pl.program_id(0)
    j = pl.program_id(1)

    @pl.when(j == 0)
    def _init():
        partial_ref[0, 0] = jnp.float32(0.0)

    x = logits_ref[...].astype(jnp.float32)              # (tile_n, C) in f32
    lbl = labels_ref[...]                                  # (tile_n, 1) int32

    # numerically stable per-row log-sum-exp (exp/log -> EUP, row reduce -> XLU)
    m = jnp.max(x, axis=-1, keepdims=True)                 # (tile_n, 1)
    lse = m + jnp.log(jnp.sum(jnp.exp(x - m), axis=-1, keepdims=True))

    # pick the logit at the label index via lane-iota compare + where
    # (no one-hot f32 cast, no extra full-tile multiply)
    col = jax.lax.broadcasted_iota(jnp.int32, x.shape, 1)
    picked = jnp.sum(jnp.where(col == lbl, x, 0.0), axis=-1, keepdims=True)

    per_row = lse - picked                                  # (tile_n, 1) NLL per sample

    # Mask rows outside the real batch: the ragged tail of the last row block
    # and any over-run blocks created by rounding the block count up to a
    # multiple of the outer 'parallel' axis (their index_map is clamped).
    blk = o * g_inner + j
    row = jax.lax.broadcasted_iota(jnp.int32, per_row.shape, 0)
    valid = (blk * tile_n + row) < n_rows
    partial_ref[0, 0] += jnp.sum(jnp.where(valid, per_row, 0.0))


def single_loss(y1: jax.Array, label: jax.Array, *, tile_n: int | None = None) -> jax.Array:
    """Mean cross-entropy loss. y1: [N, C] float (any dtype, no host upcast), label: [N] int."""
    n, c = y1.shape
    itemsize = jnp.dtype(y1.dtype).itemsize

    # ---- row-tile sizing: ~1M elements (~4 MiB f32-equivalent compute) per
    # tile keeps the ~0.35 us per-grid-step overhead well under 10% of the HBM
    # time while double-buffering comfortably on v5e/v6e/v7x.
    if tile_n is None:
        target_elems = 1 << 20
        tile_n = target_elems // max(c, 1)
    tile_n = max(32, (int(tile_n) // 32) * 32)   # multiple of 32: safe for f32/bf16/int8
    tile_n = min(tile_n, 8192)
    if tile_n >= n:
        tile_n = n                                # single full-height block (exempt from /8 rule)

    num_blocks = pl.cdiv(n, tile_n)

    # Outer 'parallel' axis lets Mosaic shard row blocks across the 2 TensorCores
    # on v7x; it is harmless (purely sequential) on single-TC v5e/v6e.
    g_outer = 2 if num_blocks >= 2 else 1
    g_inner = pl.cdiv(num_blocks, g_outer)

    labels2d = label.astype(jnp.int32).reshape(n, 1)

    def block_map(o, j):
        # clamp so padded logical blocks never DMA out of bounds; their rows are
        # masked inside the kernel.
        return (jnp.minimum(o * g_inner + j, num_blocks - 1), 0)

    kernel = functools.partial(
        _ce_loss_kernel, tile_n=tile_n, g_inner=g_inner, n_rows=n
    )

    # VMEM budget: double-buffered input blocks + in-kernel f32 intermediates
    # (cast / exp / where chains) + headroom; clamp to a range that raises the
    # scoped default where needed but stays inside v7x's 64 MiB physical VMEM.
    logits_block_bytes = tile_n * c * itemsize
    labels_block_bytes = tile_n * 128 * 4          # (tile_n, 1) i32 padded to 128 lanes
    f32_tile_bytes = tile_n * c * 4
    vmem_bytes = (2 * logits_block_bytes + 2 * labels_block_bytes
                  + 5 * f32_tile_bytes + (2 << 20))
    vmem_bytes = int(min(max(vmem_bytes, 16 << 20), 48 << 20))

    cost = pl.CostEstimate(
        flops=5 * n * c,
        transcendentals=n * c + n,
        bytes_accessed=n * c * itemsize + n * 4 + g_outer * 4,
    )

    partials = pl.pallas_call(
        kernel,
        out_shape=jax.ShapeDtypeStruct((g_outer, 1), jnp.float32),
        grid_spec=pltpu.PrefetchScalarGridSpec(
            num_scalar_prefetch=0,
            grid=(g_outer, g_inner),
            in_specs=[
                pl.BlockSpec((tile_n, c), block_map),
                pl.BlockSpec((tile_n, 1), block_map),
            ],
            out_specs=pl.BlockSpec(
                (1, 1), lambda o, j: (o, 0), memory_space=pltpu.MemorySpace.SMEM
            ),
        ),
        compiler_params=pltpu.CompilerParams(
            dimension_semantics=("parallel", "arbitrary"),
            vmem_limit_bytes=vmem_bytes,
        ),
        cost_estimate=cost,
    )(y1, labels2d)

    # Final reduction + mean in the wrapper: per-tile f32 partial sums keep the
    # accumulation well-conditioned for large N, and the divisor is the true N.
    return jnp.sum(partials) / jnp.float32(n)


def _reference(y1, label):
    logp = jax.nn.log_softmax(y1.astype(jnp.float32), axis=-1)
    return -jnp.mean(
        jnp.take_along_axis(logp, label[:, None].astype(jnp.int32), axis=-1)
    )


if __name__ == "__main__":
    key = jax.random.PRNGKey(0)
    k1, k2, k3, k4 = jax.random.split(key, 4)

    # Test 1: small batch, bf16 logits streamed straight into the kernel
    # (no host-side f32 upcast); single full-height block path.
    N1, C1 = 8, 32
    y1 = jax.random.normal(k1, (N1, C1), dtype=jnp.float32).astype(jnp.bfloat16)
    lab1 = jax.random.randint(k2, (N1,), 0, C1, dtype=jnp.int32)
    loss1 = single_loss(y1, lab1)
    jax.block_until_ready(loss1)
    ref1 = _reference(y1, lab1)
    assert jnp.allclose(loss1, ref1, atol=1e-4, rtol=1e-4), (loss1, ref1)

    # Test 2: multi-tile path with a ragged tail -- exercises the grid,
    # tail/over-run masking, and the 2-way 'parallel' outer axis.
    N2, C2 = 200, 128
    y2 = jax.random.normal(k3, (N2, C2), dtype=jnp.float32)
    lab2 = jax.random.randint(k4, (N2,), 0, C2, dtype=jnp.int32)
    loss2 = single_loss(y2, lab2, tile_n=32)
    jax.block_until_ready(loss2)
    ref2 = _reference(y2, lab2)
    assert jnp.allclose(loss2, ref2, atol=1e-5, rtol=1e-5), (loss2, ref2)

    print("KERNEL_OK")
</pallas_src>

<mosaic_0001>
module attributes {stable_mosaic.version = 11 : i64} {
  func.func @_ce_loss_kernel(%arg0: i32, %arg1: i32, %arg2: memref<8x32xbf16, #tpu.memory_space<vmem>>, %arg3: memref<8x1xi32, #tpu.memory_space<vmem>>, %arg4: memref<1x1xf32, #tpu.memory_space<smem>>) attributes {dimension_semantics = [#tpu.dimension_semantics<parallel>, #tpu.dimension_semantics<arbitrary>], iteration_bounds = array<i64: 1, 1>, scalar_prefetch = 0 : i64, scratch_operands = 0 : i64, tpu.core_type = #tpu.core_type<tc>, window_params = [{transform_indices = @transform_0, window_bounds = array<i64: 8, 32>}, {transform_indices = @transform_1, window_bounds = array<i64: 8, 1>}, {transform_indices = @transform_2, window_bounds = array<i64: 1, 1>}]} {
    %c0_i32 = arith.constant 0 : i32
    %0 = arith.cmpi eq, %arg1, %c0_i32 : i32
    %1 = arith.extui %0 : i1 to i32
    %c0_i32_0 = arith.constant 0 : i32
    %2 = arith.cmpi ne, %1, %c0_i32_0 : i32
    scf.if %2 {
      %cst_14 = arith.constant 0.000000e+00 : f32
      %c0_15 = arith.constant 0 : index
      %c0_16 = arith.constant 0 : index
      %40 = memref.load %arg4[%c0_15, %c0_16] : memref<1x1xf32, #tpu.memory_space<smem>>
      memref.store %cst_14, %arg4[%c0_15, %c0_16] : memref<1x1xf32, #tpu.memory_space<smem>>
    } else {
    }
    %c0 = arith.constant 0 : index
    %c0_1 = arith.constant 0 : index
    %3 = vector.load %arg2[%c0, %c0_1] : memref<8x32xbf16, #tpu.memory_space<vmem>>, vector<8x32xbf16>
    %4 = arith.extf %3 : vector<8x32xbf16> to vector<8x32xf32>
    %c0_2 = arith.constant 0 : index
    %c0_3 = arith.constant 0 : index
    %5 = vector.load %arg3[%c0_2, %c0_3] : memref<8x1xi32, #tpu.memory_space<vmem>>, vector<8x1xi32>
    %cst = arith.constant dense<0xFF800000> : vector<8xf32>
    %6 = vector.multi_reduction <maximumf>, %4, %cst [1] : vector<8x32xf32> to vector<8xf32>
    %7 = vector.shape_cast %6 : vector<8xf32> to vector<8x1xf32>
    %8 = vector.broadcast %7 : vector<8x1xf32> to vector<8x32xf32>
    %9 = arith.subf %4, %8 : vector<8x32xf32>
    %10 = math.exp %9 : vector<8x32xf32>
    %cst_4 = arith.constant dense<0.000000e+00> : vector<8xf32>
    %11 = vector.multi_reduction <add>, %10, %cst_4 [1] : vector<8x32xf32> to vector<8xf32>
    %12 = vector.shape_cast %11 : vector<8xf32> to vector<8x1xf32>
    %13 = math.log %12 : vector<8x1xf32>
    %14 = arith.addf %7, %13 : vector<8x1xf32>
    %15 = tpu.iota {dimensions = array<i32: 1>} : vector<8x32xi32>
    %16 = vector.broadcast %5 : vector<8x1xi32> to vector<8x32xi32>
    %17 = arith.cmpi eq, %15, %16 : vector<8x32xi32>
    %cst_5 = arith.constant 0.000000e+00 : f32
    %18 = vector.broadcast %cst_5 : f32 to vector<8x32xf32>
    %19 = arith.select %17, %4, %18 : vector<8x32xi1>, vector<8x32xf32>
    %cst_6 = arith.constant dense<0.000000e+00> : vector<8xf32>
    %20 = vector.multi_reduction <add>, %19, %cst_6 [1] : vector<8x32xf32> to vector<8xf32>
    %21 = vector.shape_cast %20 : vector<8xf32> to vector<8x1xf32>
    %22 = arith.subf %14, %21 : vector<8x1xf32>
    %c1_i32 = arith.constant 1 : i32
    %23 = arith.muli %arg0, %c1_i32 : i32
    %24 = arith.addi %23, %arg1 : i32
    %25 = tpu.iota {dimensions = array<i32: 0>} : vector<8x1xi32>
    %c8_i32 = arith.constant 8 : i32
    %26 = arith.muli %24, %c8_i32 : i32
    %27 = vector.broadcast %26 : i32 to vector<8x1xi32>
    %28 = arith.addi %27, %25 : vector<8x1xi32>
    %c8_i32_7 = arith.constant 8 : i32
    %29 = vector.broadcast %c8_i32_7 : i32 to vector<8x1xi32>
    %30 = arith.cmpi slt, %28, %29 : vector<8x1xi32>
    %c0_8 = arith.constant 0 : index
    %c0_9 = arith.constant 0 : index
    %31 = memref.load %arg4[%c0_8, %c0_9] : memref<1x1xf32, #tpu.memory_space<smem>>
    %cst_10 = arith.constant 0.000000e+00 : f32
    %32 = vector.broadcast %cst_10 : f32 to vector<8x1xf32>
    %33 = arith.select %30, %22, %32 : vector<8x1xi1>, vector<8x1xf32>
    %34 = vector.shape_cast %33 : vector<8x1xf32> to vector<1x8x1xf32>
    %cst_11 = arith.constant dense<0.000000e+00> : vector<1xf32>
    %35 = vector.multi_reduction <add>, %34, %cst_11 [1, 2] : vector<1x8x1xf32> to vector<1xf32>
    %36 = vector.shape_cast %35 : vector<1xf32> to vector<1x1x1xf32>
    %37 = vector.extract %36[0, 0, 0] : f32 from vector<1x1x1xf32>
    %38 = arith.addf %31, %37 : f32
    %c0_12 = arith.constant 0 : index
    %c0_13 = arith.constant 0 : index
    %39 = memref.load %arg4[%c0_12, %c0_13] : memref<1x1xf32, #tpu.memory_space<smem>>
    memref.store %38, %arg4[%c0_12, %c0_13] : memref<1x1xf32, #tpu.memory_space<smem>>
    return
  }
  func.func @transform_0(%arg0: i32, %arg1: i32) -> (i32, i32) {
    %c1_i32 = arith.constant 1 : i32
    %0 = arith.muli %arg0, %c1_i32 : i32
    %1 = arith.addi %0, %arg1 : i32
    %c0_i32 = arith.constant 0 : i32
    %2 = arith.minsi %1, %c0_i32 : i32
    %c0_i32_0 = arith.constant 0 : i32
    %c0_i32_1 = arith.constant 0 : i32
    return %2, %c0_i32_0 : i32, i32
  }
  func.func @transform_1(%arg0: i32, %arg1: i32) -> (i32, i32) {
    %c1_i32 = arith.constant 1 : i32
    %0 = arith.muli %arg0, %c1_i32 : i32
    %1 = arith.addi %0, %arg1 : i32
    %c0_i32 = arith.constant 0 : i32
    %2 = arith.minsi %1, %c0_i32 : i32
    %c0_i32_0 = arith.constant 0 : i32
    %c0_i32_1 = arith.constant 0 : i32
    return %2, %c0_i32_0 : i32, i32
  }
  func.func @transform_2(%arg0: i32, %arg1: i32) -> (i32, i32) {
    %c0_i32 = arith.constant 0 : i32
    %c0_i32_0 = arith.constant 0 : i32
    return %arg0, %c0_i32 : i32, i32
  }
}

</mosaic_0001>

<llo_original>
// kernel: tpu_custom_call.1
$region0: #{tpu_custom_call.1}
  #allocation0 [shape = 'u32[]', space=smem, size = 0x4, offset = 0x4, fixed_abs, tag = 'smem constant byte address 0x4 - core index']
  #allocation1 [shape = 'u32[72,128]{1,0:T(1,128)}', space=vmem, size = 0x9000, scoped, tag = 'internal scratch']
  %s0 = inlined_call_operand.vmem [shape: bf16[8,32], index: 0, kind: input, shape index: {}]
  %s1 = inlined_call_operand.vmem [shape: s32[8,1], index: 1, kind: input, shape index: {}]
  %s2 = inlined_call_operand.hbm [shape: f32[1,1], index: 2, kind: output, shape index: {}]
  %s3 = sld [smem:[#allocation0]]
  $region22: #{tpu_custom_call.1} parent=0
    _
  %s5 = ssub.s32 1, %s3
  %s6 = scalar_select 0, %s5, %s3
  $region1: #{tpu_custom_call.1} parent=0
    #allocation2 [shape = 'u8[512]{0}', space=smem, size = 0x200, scoped, tag = 'output window, operand 0, single buffered']
    #allocation3 [shape = 's32[1]{0}', space=sflag, size = 0x4, scoped, tag = 'scoped memory for tpu_custom_call.1']
    %7 = vsyncpa [#allocation3], 0
    // Predicated region
    $region2: #{tpu_custom_call.1} parent=1 // pred_check
      _
    $region3: #{tpu_custom_call.1} parent=1 // pred_check_branch
      %9 = sbr.rel (0) target = $region5
    $region4: #{tpu_custom_call.1} parent=1 // pred_region
      %s10 = sadd.s32 0, 0
      %p11 = scmp.lt.s32.totalorder %s10, 0
      %s12 = scalar_select %p11, %s10, 0
      %p13 = scmp.lt.s32.totalorder %s12, 0
      %s14 = scalar_select %p13, %s12, 0
      %s15 = smul.addr %s14, 4
      %s16 = scalar_lea.vmem %s0, %s15
      %s17 = sadd.s32 0, 0
      %p18 = scmp.lt.s32.totalorder %s17, 0
      %s19 = scalar_select %p18, %s17, 0
    $region5: #{tpu_custom_call.1} parent=1 // pred_fallthru
      _
    // Predicated region
    $region6: #{tpu_custom_call.1} parent=1 // pred_check
      _
    $region7: #{tpu_custom_call.1} parent=1 // pred_check_branch
      %21 = sbr.rel (0) target = $region9
    $region8: #{tpu_custom_call.1} parent=1 // pred_region
      %s22 = sadd.s32 0, 0
      %p23 = scmp.lt.s32.totalorder %s22, 0
      %s24 = scalar_select %p23, %s22, 0
      %p25 = scmp.lt.s32.totalorder %s24, 0
      %s26 = scalar_select %p25, %s24, 0
      %s27 = smul.addr %s26, 8
      %s28 = scalar_lea.vmem %s1, %s27
      %s29 = sadd.s32 0, 0
      %p30 = scmp.lt.s32.totalorder %s29, 0
      %s31 = scalar_select %p30, %s29, 0
    $region9: #{tpu_custom_call.1} parent=1 // pred_fallthru
      _
    %s32 = sadd.s32 0, 0
    %p33 = scmp.lt.s32.totalorder %s32, 0
    %s34 = scalar_select %p33, %s32, 0
    %p35 = scmp.lt.s32.totalorder %s34, 0
    %s36 = scalar_select %p35, %s34, 0
    %s37 = smul.addr %s36, 4
    %s38 = scalar_lea.vmem %s0, %s37
    %s39 = sadd.s32 0, 0
    %p40 = scmp.lt.s32.totalorder %s39, 0
    %s41 = scalar_select %p40, %s39, 0
    %p42 = scmp.lt.s32.totalorder %s41, 0
    %s43 = scalar_select %p42, %s41, 0
    %s44 = smul.addr %s43, 8
    %s45 = scalar_lea.vmem %s1, %s44
    %s46 = sadd.s32 0, 0
    %p47 = scmp.lt.s32.totalorder %s46, 0
    %s48 = scalar_select %p47, %s46, 0
    %p49 = scmp.lt.s32.totalorder %s48, 0
    %s50 = scalar_select %p49, %s48, 0
    %s51 = smul.addr %s50, 4
    %s52 = scalar_lea.vmem %s0, %s51
    %s53 = sadd.s32 0, 0
    %p54 = scmp.lt.s32.totalorder %s53, 0
    %s55 = scalar_select %p54, %s53, 0
    %s56 = sadd.s32 0, 0
    %p57 = scmp.lt.s32.totalorder %s56, 0
    %s58 = scalar_select %p57, %s56, 0
    %p59 = scmp.lt.s32.totalorder %s58, 0
    %s60 = scalar_select %p59, %s58, 0
    %s61 = smul.addr %s60, 8
    %s62 = scalar_lea.vmem %s1, %s61
    %s63 = sadd.s32 0, 0
    %p64 = scmp.lt.s32.totalorder %s63, 0
    %s65 = scalar_select %p64, %s63, 0
    %p66 = scmp.eq.s32.totalorder 0, 0
    // Predicated region
    $region10: #{tpu_custom_call.1} parent=1 // pred_check
      %p67 = pneg %p66
    $region11: #{tpu_custom_call.1} parent=1 // pred_check_branch
      %69 = sbr.rel (%p67) target = $region13
    $region12: #{tpu_custom_call.1} parent=1 // pred_region
      %s70 = scalar_lea.smem [#allocation2], 0
      %71 = sst [smem:[%s70]] 0.0
    $region13: #{tpu_custom_call.1} parent=1 // pred_fallthru
      _
    %v72 = vld [vmem:[%s52] sm:$0xf]
    %v73 = vunpack.c.l.bf16 %v72
    %v74 = vld [vmem:[%s62] sm:$0xff]
    %vm75 = vcmask 261120
    %v76 = vsel %vm75, %v73, -inf
    %77 = vmax.xlane.f32.xlu0 %v76
    %v78 = vpop.xlane.xlu0 %77
    %v79 = vsub.f32 %v73, %v78
    %v80 = vmul.f32 %v79, 1.442695
    %v81 = vpow.pop %v80
    %v82 = vsel %vm75, %v81, 0.0
    %83 = vadd.xlane.f32.xlu0 %v82
    %v84 = vpop.xlane.xlu0 %83
    %v85 = vlog2.pop %v84
    %v86 = vmul.f32 %v85, 0.6931472
    %v87 = vadd.f32 %v78, %v86
    %v88 = vlaneseq
    %v89 = vand.u32 %v88, 127
    %90 = vset.pattern.permute.xlu0 0
    %91 = vperm.xlu0 %90, %v74
    %v92 = vpop.permute.xlu0 %91
    %vm93 = vcmp.eq.s32.totalorder %v89, %v92
    %v94 = vsel %vm93, %v73, 0.0
    %v95 = vsel %vm75, %v94, 0.0
    %96 = vadd.xlane.f32.xlu0 %v95
    %v97 = vpop.xlane.xlu0 %96
    %v98 = vsub.f32 %v87, %v97
    %s99 = sadd.s32 0, 0
    %v100 = vlaneseq
    %v101 = vshrl.u32 %v100, 7
    %s102 = smul.u32 %s99, 8
    %v103 = vstv %s102
    %v104 = vadd.s32 %v103, %v101
    %vm105 = vcmp.lt.s32.totalorder %v104, 8
    %s106 = sld [smem:[#allocation2]]
    %v107 = vsel %vm105, %v98, 0.0
    %vm108 = vcmask 7168
    %v109 = vsel %vm108, %v107, 0.0
    %110 = vadd.xlane.f32.xlu0 %v109
    %v111 = vpop.xlane.xlu0 %110
    %v112 = vrot.slane %v111, 4
    %v113 = vadd.f32 %v111, %v112
    %v114 = vrot.slane %v113, 2
    %v115 = vadd.f32 %v113, %v114
    %v116 = vrot.slane %v115, 1
    %v117 = vadd.f32 %v115, %v116
    %s118 = vtos %v117
    %s119 = sadd.f32 %s106, %s118
    %s120 = scalar_lea.smem [#allocation2], 0
    %121 = sst [smem:[%s120]] %s119
    // Predicated region
    $region14: #{tpu_custom_call.1} parent=1 // pred_check
      _
    $region15: #{tpu_custom_call.1} parent=1 // pred_check_branch
      %123 = sbr.rel (0) target = $region17
    $region16: #{tpu_custom_call.1} parent=1 // pred_region
      %125 = vsyncadd [#allocation3], 0
      %s127 = sshll.u32 %s2, 4
      %s128 = int_to_ptr.hbm [resolvable:$true] %s127
      %130 = dma.smem_to_hbm [#allocation2], 16, %s128, [#allocation3]
    $region17: #{tpu_custom_call.1} parent=1 // pred_fallthru
      _
    // Predicated region
    $region18: #{tpu_custom_call.1} parent=1 // pred_check
      _
    $region19: #{tpu_custom_call.1} parent=1 // pred_check_branch
      %132 = sbr.rel (0) target = $region21
    $region20: #{tpu_custom_call.1} parent=1 // pred_region
      %134 = dma.done [#allocation3], 16
    $region21: #{tpu_custom_call.1} parent=1 // pred_fallthru
      _
    %135 = sfence
    %136 = vsyncpa [#allocation3], 1

</llo_original>
